<compile_context>
chip_gen: v5e
topology: v5e:2x2
jax: 0.10.0
libtpu: 0.0.40
codegen_flags: <defaults>
</compile_context>

<pallas_src>
import functools

import jax
import jax.numpy as jnp
from jax.experimental import pallas as pl
from jax.experimental.pallas import tpu as pltpu

_LANE = 128
_MAX_TB = 8          # batch rows folded into one grid step


def _rsd_kernel(loss2d_ref, lossT_ref, out_ref, *, n_real, tb):
    """Per grid step: `tb` batch rows.

    loss2d_ref : (tb, Rc, 128) f32  -- L1 loss per point, zero-padded tail
    lossT_ref  : (tb, 128, Rc) f32  -- same values transposed per row, +inf-padded tail
    out_ref    : (tb, 256)     f32  -- lanes 0..127 = row sum, 128..255 = row median
    """
    rc = loss2d_ref.shape[1]
    kth = float((n_real - 1) // 2 + 1)   # torch.median -> lower middle = k-th smallest

    lane_iota = jax.lax.broadcasted_iota(jnp.int32, (1, _LANE), 1)
    ones_bf16 = jnp.ones((1, _LANE), dtype=jnp.bfloat16)
    col_iota = jax.lax.broadcasted_iota(jnp.int32, (tb, 2 * _LANE), 1)
    row_iota = jax.lax.broadcasted_iota(jnp.int32, (tb, 2 * _LANE), 0)

    out_val = jnp.zeros((tb, 2 * _LANE), jnp.float32)
    for b in range(tb):                          # static, tb <= 8
        row = loss2d_ref[b]                      # (Rc, 128); padded tail is 0
        row_sum = jnp.sum(row)                   # pad contributes exactly 0
        popT = lossT_ref[b]                      # (128, Rc); padded tail is +inf
        cand_view = loss2d_ref.at[b]             # Ref view (Rc, 128)

        def count_tile(c, running_min):
            # One 128-wide candidate tile: count, per candidate, how many
            # population values are <= it, then fold the conditional min
            # (k-th smallest = min{x : #{y <= x} >= k}).
            cand_raw = cand_view[pl.ds(c, 1), :]                       # (1, 128)
            cand = jnp.where(c * _LANE + lane_iota < n_real, cand_raw, jnp.inf)
            cnt = jnp.zeros((1, _LANE), jnp.float32)
            # TODO(synk): for very large N (>~4k points) replace this
            # O(N^2/128) counting loop with a ~32-step bisection on the float
            # bit pattern (same counting primitive, O(32*N) work).
            for r in range(rc):                                        # static unroll
                pop_col = popT[:, r:r + 1]                             # (128, 1), +inf pad
                # compare in f32 (v5e VPU has no bf16 ALU); cast only the mask
                leq = (pop_col <= cand).astype(jnp.bfloat16)           # (128, 128) bf16
                cnt = cnt + jnp.dot(ones_bf16, leq,
                                    preferred_element_type=jnp.float32)
            return jnp.minimum(running_min, jnp.where(cnt >= kth, cand, jnp.inf))

        run_min = jax.lax.fori_loop(
            0, rc, count_tile, jnp.full((1, _LANE), jnp.inf, jnp.float32))
        med = jnp.min(run_min)
        # torch.median propagates NaN; the row sum is NaN iff the row has one.
        med = jnp.where(jnp.isnan(row_sum), jnp.float32(jnp.nan), med)

        val_b = jnp.where(col_iota < _LANE, row_sum, med)   # (tb, 256) broadcast
        out_val = jnp.where(row_iota == b, val_b, out_val)

    out_ref[...] = out_val                       # single lane-dense store


def _rsd_pallas(loss2d, lossT, n_real, tb):
    b_pad, rc, _ = loss2d.shape
    kernel = functools.partial(_rsd_kernel, n_real=n_real, tb=tb)
    out = pl.pallas_call(
        kernel,
        out_shape=jax.ShapeDtypeStruct((b_pad, 2 * _LANE), jnp.float32),
        grid_spec=pltpu.PrefetchScalarGridSpec(
            num_scalar_prefetch=0,
            grid=(b_pad // tb,),
            in_specs=[
                pl.BlockSpec((tb, rc, _LANE), lambda i: (i, 0, 0)),
                pl.BlockSpec((tb, _LANE, rc), lambda i: (i, 0, 0)),
            ],
            out_specs=pl.BlockSpec((tb, 2 * _LANE), lambda i: (i, 0)),
        ),
        compiler_params=pltpu.CompilerParams(
            # TODO(synk): for B<=2 on v7x add a parallel grid axis over
            # candidate tiles (partial conditional-mins merged in the wrapper)
            # so both TensorCores stay busy.
            dimension_semantics=("parallel",),
        ),
    )(loss2d, lossT)
    return out[:, 0], out[:, _LANE]


@jax.jit
def _rsd_forward(pred, gt):
    """pred/gt: (B, N, D). Returns (mean L1 loss, per-row median of the L1 map)."""
    B, N, _ = pred.shape
    assert N < (1 << 24)   # rank counts are held exactly in f32
    # Fused XLA elementwise; the kernel only ever sees the (B, N) loss map.
    loss = jnp.sum(jnp.abs(pred.astype(jnp.float32) - gt.astype(jnp.float32)), axis=-1)

    n_pad = pl.cdiv(N, _LANE) * _LANE
    rc = n_pad // _LANE
    tb = B if B <= _MAX_TB else _MAX_TB
    b_pad = B if B <= _MAX_TB else pl.cdiv(B, tb) * tb

    loss_b = jnp.pad(loss, ((0, b_pad - B), (0, 0)))
    # zero-padded view -> exact row sums; +inf-padded transposed view -> the
    # padded tail never inflates rank counts (L1 values are finite, >= 0).
    loss2d = jnp.pad(loss_b, ((0, 0), (0, n_pad - N))).reshape(b_pad, rc, _LANE)
    lossT = jnp.pad(loss_b, ((0, 0), (0, n_pad - N)),
                    constant_values=jnp.inf).reshape(b_pad, rc, _LANE)
    lossT = jnp.transpose(lossT, (0, 2, 1))                 # (b_pad, 128, rc)

    sums, meds = _rsd_pallas(loss2d, lossT, N, tb)
    mean_loss = jnp.sum(sums[:B]) / (B * N)
    return mean_loss, meds[:B]


class RSDCriterion:
    """JAX/Pallas port of RSD_Criterion (forward only)."""

    def __init__(self, first_prune_epoch, second_prune_epoch, windows):
        self.first_prune_epoch = first_prune_epoch
        self.second_prune_epoch = second_prune_epoch
        self.windows = windows

    def __call__(self, pred_point, gt_point, batch_size, epoch_nums, idx, values):
        D = pred_point.shape[-1]
        pred = jnp.asarray(pred_point, jnp.float32).reshape(batch_size, -1, D)
        gt = jnp.asarray(gt_point, jnp.float32).reshape(batch_size, -1, D)
        mean_loss, med = _rsd_forward(pred, gt)

        # Host-side epoch-window branching + scatter into `values` (plain
        # Python control flow, mirroring the PyTorch module). `epoch_nums`
        # must be a concrete Python number here (do not trace it).
        if self.first_prune_epoch <= epoch_nums < self.first_prune_epoch + self.windows:
            values = values.at[idx, epoch_nums - self.first_prune_epoch].set(med)
        elif self.second_prune_epoch <= epoch_nums < self.second_prune_epoch + self.windows:
            values = values.at[idx, epoch_nums - self.second_prune_epoch].set(med)
        return mean_loss, values


if __name__ == "__main__":
    key = jax.random.PRNGKey(0)
    k1, k2, k3, k4 = jax.random.split(key, 4)

    # --- primary example -------------------------------------------------
    B, N, D = 2, 64, 3                  # batch, points per sample, coord dim
    num_samples, windows = 10, 3        # size of the bookkeeping `values` table
    pred = jax.random.normal(k1, (B, N, D), dtype=jnp.float32)
    gt = jax.random.normal(k2, (B, N, D), dtype=jnp.float32)
    values = jnp.zeros((num_samples, windows), dtype=jnp.float32)
    idx = jnp.array([3, 7], dtype=jnp.int32)

    crit = RSDCriterion(first_prune_epoch=5, second_prune_epoch=20, windows=windows)
    epoch_nums = 5                      # inside first prune window -> column 0
    loss, new_values = crit(pred, gt, B, epoch_nums, idx, values)
    jax.block_until_ready((loss, new_values))

    lm = jnp.sum(jnp.abs(pred - gt), axis=-1)
    ref_mean = jnp.mean(lm)
    ref_med = jnp.sort(lm, axis=1)[:, (N - 1) // 2]     # torch lower-median
    ref_values = values.at[idx, 0].set(ref_med)
    assert jnp.allclose(loss, ref_mean, atol=1e-5, rtol=1e-4)
    assert jnp.allclose(new_values, ref_values, atol=1e-5, rtol=1e-4)

    # --- second shape: non-multiple-of-128 points, batch > TB -------------
    B2, N2 = 10, 200
    pred2 = jax.random.normal(k3, (B2, N2, D), dtype=jnp.float32)
    gt2 = jax.random.normal(k4, (B2, N2, D), dtype=jnp.float32)
    mean2, med2 = _rsd_forward(pred2, gt2)
    jax.block_until_ready((mean2, med2))
    lm2 = jnp.sum(jnp.abs(pred2 - gt2), axis=-1)
    assert jnp.allclose(mean2, jnp.mean(lm2), atol=1e-5, rtol=1e-4)
    assert jnp.allclose(med2, jnp.sort(lm2, axis=1)[:, (N2 - 1) // 2],
                        atol=1e-5, rtol=1e-4)

    print("KERNEL_OK")
</pallas_src>

<mosaic_0001>
module attributes {stable_mosaic.version = 11 : i64} {
  func.func @_rsd_kernel(%arg0: i32, %arg1: memref<2x1x128xf32, #tpu.memory_space<vmem>>, %arg2: memref<2x128x1xf32, #tpu.memory_space<vmem>>, %arg3: memref<2x256xf32, #tpu.memory_space<vmem>>) attributes {dimension_semantics = [#tpu.dimension_semantics<parallel>], iteration_bounds = array<i64: 1>, scalar_prefetch = 0 : i64, scratch_operands = 0 : i64, tpu.core_type = #tpu.core_type<tc>, window_params = [{transform_indices = @transform_0, window_bounds = array<i64: 2, 1, 128>}, {transform_indices = @transform_1, window_bounds = array<i64: 2, 128, 1>}, {transform_indices = @transform_2, window_bounds = array<i64: 2, 256>}]} {
    %0 = tpu.iota {dimensions = array<i32: 1>} : vector<1x128xi32>
    %cst = arith.constant 1.000000e+00 : bf16
    %1 = vector.broadcast %cst : bf16 to vector<1x128xbf16>
    %2 = tpu.iota {dimensions = array<i32: 1>} : vector<2x256xi32>
    %3 = tpu.iota {dimensions = array<i32: 0>} : vector<2x256xi32>
    %cst_0 = arith.constant 0.000000e+00 : f32
    %4 = vector.broadcast %cst_0 : f32 to vector<2x256xf32>
    %c0 = arith.constant 0 : index
    %c0_1 = arith.constant 0 : index
    %c0_2 = arith.constant 0 : index
    %5 = vector.load %arg1[%c0, %c0_1, %c0_2] : memref<2x1x128xf32, #tpu.memory_space<vmem>>, vector<1x1x128xf32>
    %6 = vector.shape_cast %5 : vector<1x1x128xf32> to vector<1x128xf32>
    %7 = vector.shape_cast %6 : vector<1x128xf32> to vector<1x1x128xf32>
    %cst_3 = arith.constant dense<0.000000e+00> : vector<1xf32>
    %8 = vector.multi_reduction <add>, %7, %cst_3 [1, 2] : vector<1x1x128xf32> to vector<1xf32>
    %9 = vector.shape_cast %8 : vector<1xf32> to vector<1x1x1xf32>
    %10 = vector.extract %9[0, 0, 0] : f32 from vector<1x1x1xf32>
    %c0_4 = arith.constant 0 : index
    %c0_5 = arith.constant 0 : index
    %c0_6 = arith.constant 0 : index
    %11 = vector.load %arg2[%c0_4, %c0_5, %c0_6] : memref<2x128x1xf32, #tpu.memory_space<vmem>>, vector<1x128x1xf32>
    %12 = vector.shape_cast %11 : vector<1x128x1xf32> to vector<128x1xf32>
    %cst_7 = arith.constant 0x7F800000 : f32
    %13 = vector.broadcast %cst_7 : f32 to vector<1x128xf32>
    %c0_i32 = arith.constant 0 : i32
    %c0_i32_8 = arith.constant 0 : i32
    %c0_i32_9 = arith.constant 0 : i32
    %c0_i32_10 = arith.constant 0 : i32
    %14 = tpu.memref_slice %arg1[%c0_i32, %c0_i32_9, %c0_i32_10] : memref<2x1x128xf32, #tpu.memory_space<vmem>> -> memref<1x1x128xf32, #tpu.memory_space<vmem>>
    %15 = tpu.memref_squeeze %14 : memref<1x1x128xf32, #tpu.memory_space<vmem>> -> memref<1x128xf32, #tpu.memory_space<vmem>>
    %16 = arith.index_cast %c0_i32_8 : i32 to index
    %c0_11 = arith.constant 0 : index
    %17 = vector.load %15[%16, %c0_11] : memref<1x128xf32, #tpu.memory_space<vmem>>, vector<1x128xf32>
    %c128_i32 = arith.constant 128 : i32
    %18 = arith.muli %c0_i32_8, %c128_i32 : i32
    %19 = vector.broadcast %18 : i32 to vector<1x128xi32>
    %20 = arith.addi %19, %0 : vector<1x128xi32>
    %c64_i32 = arith.constant 64 : i32
    %21 = vector.broadcast %c64_i32 : i32 to vector<1x128xi32>
    %22 = arith.cmpi slt, %20, %21 : vector<1x128xi32>
    %cst_12 = arith.constant 0x7F800000 : f32
    %23 = vector.broadcast %cst_12 : f32 to vector<1x128xf32>
    %24 = arith.select %22, %17, %23 : vector<1x128xi1>, vector<1x128xf32>
    %cst_13 = arith.constant 0.000000e+00 : f32
    %25 = vector.broadcast %cst_13 : f32 to vector<1x128xf32>
    %26 = vector.broadcast %12 : vector<128x1xf32> to vector<128x128xf32>
    %27 = vector.broadcast %24 : vector<1x128xf32> to vector<128x128xf32>
    %28 = arith.cmpf ole, %26, %27 : vector<128x128xf32>
    %29 = arith.extui %28 : vector<128x128xi1> to vector<128x128xi32>
    %30 = arith.sitofp %29 : vector<128x128xi32> to vector<128x128xf32>
    %31 = arith.truncf %30 : vector<128x128xf32> to vector<128x128xbf16>
    %cst_14 = arith.constant dense<0.000000e+00> : vector<1x128xf32>
    %32 = tpu.matmul %1, %31, %cst_14 {dimension_numbers = #tpu.dot_dimension_numbers<[1], [0], [0], [1], [0, 0, 1, 1], [], []>} : vector<1x128xbf16>, vector<128x128xbf16>, vector<1x128xf32> -> vector<1x128xf32>
    %33 = arith.addf %25, %32 : vector<1x128xf32>
    %cst_15 = arith.constant 3.200000e+01 : f32
    %34 = vector.broadcast %cst_15 : f32 to vector<1x128xf32>
    %35 = arith.cmpf oge, %33, %34 : vector<1x128xf32>
    %cst_16 = arith.constant 0x7F800000 : f32
    %36 = vector.broadcast %cst_16 : f32 to vector<1x128xf32>
    %37 = arith.select %35, %24, %36 : vector<1x128xi1>, vector<1x128xf32>
    %38 = arith.minimumf %13, %37 : vector<1x128xf32>
    %c1_i32 = arith.constant 1 : i32
    %39 = vector.shape_cast %38 : vector<1x128xf32> to vector<1x1x128xf32>
    %cst_17 = arith.constant dense<0x7F800000> : vector<1xf32>
    %40 = vector.multi_reduction <minimumf>, %39, %cst_17 [1, 2] : vector<1x1x128xf32> to vector<1xf32>
    %41 = vector.shape_cast %40 : vector<1xf32> to vector<1x1x1xf32>
    %42 = vector.extract %41[0, 0, 0] : f32 from vector<1x1x1xf32>
    %43 = arith.cmpf one, %10, %10 : f32
    %cst_18 = arith.constant 0x7FC00000 : f32
    %44 = arith.select %43, %cst_18, %42 : f32
    %c128_i32_19 = arith.constant 128 : i32
    %45 = vector.broadcast %c128_i32_19 : i32 to vector<2x256xi32>
    %46 = arith.cmpi slt, %2, %45 : vector<2x256xi32>
    %47 = vector.broadcast %10 : f32 to vector<2x256xf32>
    %48 = vector.broadcast %44 : f32 to vector<2x256xf32>
    %49 = arith.select %46, %47, %48 : vector<2x256xi1>, vector<2x256xf32>
    %c0_i32_20 = arith.constant 0 : i32
    %50 = vector.broadcast %c0_i32_20 : i32 to vector<2x256xi32>
    %51 = arith.cmpi eq, %3, %50 : vector<2x256xi32>
    %52 = arith.select %51, %49, %4 : vector<2x256xi1>, vector<2x256xf32>
    %c1 = arith.constant 1 : index
    %c0_21 = arith.constant 0 : index
    %c0_22 = arith.constant 0 : index
    %53 = vector.load %arg1[%c1, %c0_21, %c0_22] : memref<2x1x128xf32, #tpu.memory_space<vmem>>, vector<1x1x128xf32>
    %54 = vector.shape_cast %53 : vector<1x1x128xf32> to vector<1x128xf32>
    %55 = vector.shape_cast %54 : vector<1x128xf32> to vector<1x1x128xf32>
    %cst_23 = arith.constant dense<0.000000e+00> : vector<1xf32>
    %56 = vector.multi_reduction <add>, %55, %cst_23 [1, 2] : vector<1x1x128xf32> to vector<1xf32>
    %57 = vector.shape_cast %56 : vector<1xf32> to vector<1x1x1xf32>
    %58 = vector.extract %57[0, 0, 0] : f32 from vector<1x1x1xf32>
    %c1_24 = arith.constant 1 : index
    %c0_25 = arith.constant 0 : index
    %c0_26 = arith.constant 0 : index
    %59 = vector.load %arg2[%c1_24, %c0_25, %c0_26] : memref<2x128x1xf32, #tpu.memory_space<vmem>>, vector<1x128x1xf32>
    %60 = vector.shape_cast %59 : vector<1x128x1xf32> to vector<128x1xf32>
    %cst_27 = arith.constant 0x7F800000 : f32
    %61 = vector.broadcast %cst_27 : f32 to vector<1x128xf32>
    %c1_i32_28 = arith.constant 1 : i32
    %c0_i32_29 = arith.constant 0 : i32
    %c0_i32_30 = arith.constant 0 : i32
    %c0_i32_31 = arith.constant 0 : i32
    %62 = tpu.memref_slice %arg1[%c1_i32_28, %c0_i32_30, %c0_i32_31] : memref<2x1x128xf32, #tpu.memory_space<vmem>> -> memref<1x1x128xf32, #tpu.memory_space<vmem>>
    %63 = tpu.memref_squeeze %62 : memref<1x1x128xf32, #tpu.memory_space<vmem>> -> memref<1x128xf32, #tpu.memory_space<vmem>>
    %64 = arith.index_cast %c0_i32_29 : i32 to index
    %c0_32 = arith.constant 0 : index
    %65 = vector.load %63[%64, %c0_32] : memref<1x128xf32, #tpu.memory_space<vmem>>, vector<1x128xf32>
    %c128_i32_33 = arith.constant 128 : i32
    %66 = arith.muli %c0_i32_29, %c128_i32_33 : i32
    %67 = vector.broadcast %66 : i32 to vector<1x128xi32>
    %68 = arith.addi %67, %0 : vector<1x128xi32>
    %c64_i32_34 = arith.constant 64 : i32
    %69 = vector.broadcast %c64_i32_34 : i32 to vector<1x128xi32>
    %70 = arith.cmpi slt, %68, %69 : vector<1x128xi32>
    %cst_35 = arith.constant 0x7F800000 : f32
    %71 = vector.broadcast %cst_35 : f32 to vector<1x128xf32>
    %72 = arith.select %70, %65, %71 : vector<1x128xi1>, vector<1x128xf32>
    %cst_36 = arith.constant 0.000000e+00 : f32
    %73 = vector.broadcast %cst_36 : f32 to vector<1x128xf32>
    %74 = vector.broadcast %60 : vector<128x1xf32> to vector<128x128xf32>
    %75 = vector.broadcast %72 : vector<1x128xf32> to vector<128x128xf32>
    %76 = arith.cmpf ole, %74, %75 : vector<128x128xf32>
    %77 = arith.extui %76 : vector<128x128xi1> to vector<128x128xi32>
    %78 = arith.sitofp %77 : vector<128x128xi32> to vector<128x128xf32>
    %79 = arith.truncf %78 : vector<128x128xf32> to vector<128x128xbf16>
    %cst_37 = arith.constant dense<0.000000e+00> : vector<1x128xf32>
    %80 = tpu.matmul %1, %79, %cst_37 {dimension_numbers = #tpu.dot_dimension_numbers<[1], [0], [0], [1], [0, 0, 1, 1], [], []>} : vector<1x128xbf16>, vector<128x128xbf16>, vector<1x128xf32> -> vector<1x128xf32>
    %81 = arith.addf %73, %80 : vector<1x128xf32>
    %cst_38 = arith.constant 3.200000e+01 : f32
    %82 = vector.broadcast %cst_38 : f32 to vector<1x128xf32>
    %83 = arith.cmpf oge, %81, %82 : vector<1x128xf32>
    %cst_39 = arith.constant 0x7F800000 : f32
    %84 = vector.broadcast %cst_39 : f32 to vector<1x128xf32>
    %85 = arith.select %83, %72, %84 : vector<1x128xi1>, vector<1x128xf32>
    %86 = arith.minimumf %61, %85 : vector<1x128xf32>
    %c1_i32_40 = arith.constant 1 : i32
    %87 = vector.shape_cast %86 : vector<1x128xf32> to vector<1x1x128xf32>
    %cst_41 = arith.constant dense<0x7F800000> : vector<1xf32>
    %88 = vector.multi_reduction <minimumf>, %87, %cst_41 [1, 2] : vector<1x1x128xf32> to vector<1xf32>
    %89 = vector.shape_cast %88 : vector<1xf32> to vector<1x1x1xf32>
    %90 = vector.extract %89[0, 0, 0] : f32 from vector<1x1x1xf32>
    %91 = arith.cmpf one, %58, %58 : f32
    %cst_42 = arith.constant 0x7FC00000 : f32
    %92 = arith.select %91, %cst_42, %90 : f32
    %c128_i32_43 = arith.constant 128 : i32
    %93 = vector.broadcast %c128_i32_43 : i32 to vector<2x256xi32>
    %94 = arith.cmpi slt, %2, %93 : vector<2x256xi32>
    %95 = vector.broadcast %58 : f32 to vector<2x256xf32>
    %96 = vector.broadcast %92 : f32 to vector<2x256xf32>
    %97 = arith.select %94, %95, %96 : vector<2x256xi1>, vector<2x256xf32>
    %c1_i32_44 = arith.constant 1 : i32
    %98 = vector.broadcast %c1_i32_44 : i32 to vector<2x256xi32>
    %99 = arith.cmpi eq, %3, %98 : vector<2x256xi32>
    %100 = arith.select %99, %97, %52 : vector<2x256xi1>, vector<2x256xf32>
    %c0_45 = arith.constant 0 : index
    %c0_46 = arith.constant 0 : index
    %101 = vector.load %arg3[%c0_45, %c0_46] : memref<2x256xf32, #tpu.memory_space<vmem>>, vector<2x256xf32>
    tpu.vector_store %arg3[%c0_45, %c0_46], %100 {strides = array<i32>} : memref<2x256xf32, #tpu.memory_space<vmem>>, vector<2x256xf32>,
    return
  }
  func.func @transform_0(%arg0: i32) -> (i32, i32, i32) {
    %c0_i32 = arith.constant 0 : i32
    %c0_i32_0 = arith.constant 0 : i32
    %c0_i32_1 = arith.constant 0 : i32
    return %arg0, %c0_i32, %c0_i32_0 : i32, i32, i32
  }
  func.func @transform_1(%arg0: i32) -> (i32, i32, i32) {
    %c0_i32 = arith.constant 0 : i32
    %c0_i32_0 = arith.constant 0 : i32
    %c0_i32_1 = arith.constant 0 : i32
    return %arg0, %c0_i32, %c0_i32_0 : i32, i32, i32
  }
  func.func @transform_2(%arg0: i32) -> (i32, i32) {
    %c0_i32 = arith.constant 0 : i32
    %c0_i32_0 = arith.constant 0 : i32
    return %arg0, %c0_i32 : i32, i32
  }
}

</mosaic_0001>

<llo_original>
// kernel: _rsd_forward.1
$region0: #{_rsd_forward.1}
  #allocation0 [shape = 'u32[]', space=smem, size = 0x4, offset = 0x4, fixed_abs, tag = 'smem constant byte address 0x4 - core index']
  #allocation1 [shape = 'u32[72,128]{1,0:T(1,128)}', space=vmem, size = 0x9000, scoped, tag = 'internal scratch']
  %s0 = inlined_call_operand.vmem [shape: f32[2,1,128], index: 0, kind: input, shape index: {}]
  %s1 = inlined_call_operand.vmem [shape: f32[2,128,1], index: 1, kind: input, shape index: {}]
  %s2 = inlined_call_operand.vmem [shape: f32[2,256], index: 2, kind: output, shape index: {}]
  %s3 = sld [smem:[#allocation0]]
  $region18: #{_rsd_forward.1} parent=0
    _
  %s5 = ssub.s32 1, %s3
  %s6 = scalar_select 0, %s5, %s3
  // Predicated region
  $region2: #{_rsd_forward.1} parent=0 // pred_check
    _
  $region3: #{_rsd_forward.1} parent=0 // pred_check_branch
    %8 = sbr.rel (0) target = $region5
  $region4: #{_rsd_forward.1} parent=0 // pred_region
    _
  $region5: #{_rsd_forward.1} parent=0 // pred_fallthru
    _
  // Predicated region
  $region6: #{_rsd_forward.1} parent=0 // pred_check
    _
  $region7: #{_rsd_forward.1} parent=0 // pred_check_branch
    %10 = sbr.rel (0) target = $region9
  $region8: #{_rsd_forward.1} parent=0 // pred_region
    _
  $region9: #{_rsd_forward.1} parent=0 // pred_fallthru
    _
  %v12 = vlaneseq
  %v13 = vand.u32 %v12, 127
  %v14 = vadd.s32 %v13, 128
  %v15 = vlaneseq
  %v16 = vshrl.u32 %v15, 7
  %v17 = vld [vmem:[%s0] sm:$0x1]
  %vm18 = vcmask 1040384
  %v19 = vsel %vm18, %v17, 0.0
  %20 = vadd.xlane.f32.xlu0 %v19
  %v21 = vpop.xlane.xlu0 %20
  %v22 = vrot.slane %v21, 4
  %v23 = vadd.f32 %v21, %v22
  %v24 = vrot.slane %v23, 2
  %v25 = vadd.f32 %v23, %v24
  %v26 = vrot.slane %v25, 1
  %v27 = vadd.f32 %v25, %v26
  %s28 = vtos %v27
  %v29 = vld [vmem:[%s1] sm:$0xff]
  %v30 = vld [vmem:[%s1 + $0x8] sm:$0xff]
  %v31 = vld [vmem:[%s1 + $0x10] sm:$0xff]
  %v32 = vld [vmem:[%s1 + $0x18] sm:$0xff]
  %v33 = vld [vmem:[%s1 + $0x20] sm:$0xff]
  %v34 = vld [vmem:[%s1 + $0x28] sm:$0xff]
  %v35 = vld [vmem:[%s1 + $0x30] sm:$0xff]
  %v36 = vld [vmem:[%s1 + $0x38] sm:$0xff]
  %v37 = vld [vmem:[%s1 + $0x40] sm:$0xff]
  %v38 = vld [vmem:[%s1 + $0x48] sm:$0xff]
  %v39 = vld [vmem:[%s1 + $0x50] sm:$0xff]
  %v40 = vld [vmem:[%s1 + $0x58] sm:$0xff]
  %v41 = vld [vmem:[%s1 + $0x60] sm:$0xff]
  %v42 = vld [vmem:[%s1 + $0x68] sm:$0xff]
  %v43 = vld [vmem:[%s1 + $0x70] sm:$0xff]
  %v44 = vld [vmem:[%s1 + $0x78] sm:$0xff]
  %vm45 = vcmp.lt.s32.totalorder %v13, 64
  %v46 = vsel %vm45, %v17, inf
  %48 = vset.pattern.permute.xlu0 0
  %49 = vperm.xlu0 %48, %v29
  %v50 = vpop.permute.xlu0 %49
  %53 = vset.pattern.permute.xlu0 0
  %54 = vperm.xlu0 %53, %v30
  %v55 = vpop.permute.xlu0 %54
  %58 = vset.pattern.permute.xlu0 0
  %59 = vperm.xlu0 %58, %v31
  %v60 = vpop.permute.xlu0 %59
  %63 = vset.pattern.permute.xlu0 0
  %64 = vperm.xlu0 %63, %v32
  %v65 = vpop.permute.xlu0 %64
  %68 = vset.pattern.permute.xlu0 0
  %69 = vperm.xlu0 %68, %v33
  %v70 = vpop.permute.xlu0 %69
  %73 = vset.pattern.permute.xlu0 0
  %74 = vperm.xlu0 %73, %v34
  %v75 = vpop.permute.xlu0 %74
  %78 = vset.pattern.permute.xlu0 0
  %79 = vperm.xlu0 %78, %v35
  %v80 = vpop.permute.xlu0 %79
  %83 = vset.pattern.permute.xlu0 0
  %84 = vperm.xlu0 %83, %v36
  %v85 = vpop.permute.xlu0 %84
  %88 = vset.pattern.permute.xlu0 0
  %89 = vperm.xlu0 %88, %v37
  %v90 = vpop.permute.xlu0 %89
  %93 = vset.pattern.permute.xlu0 0
  %94 = vperm.xlu0 %93, %v38
  %v95 = vpop.permute.xlu0 %94
  %98 = vset.pattern.permute.xlu0 0
  %99 = vperm.xlu0 %98, %v39
  %v100 = vpop.permute.xlu0 %99
  %103 = vset.pattern.permute.xlu0 0
  %104 = vperm.xlu0 %103, %v40
  %v105 = vpop.permute.xlu0 %104
  %108 = vset.pattern.permute.xlu0 0
  %109 = vperm.xlu0 %108, %v41
  %v110 = vpop.permute.xlu0 %109
  %113 = vset.pattern.permute.xlu0 0
  %114 = vperm.xlu0 %113, %v42
  %v115 = vpop.permute.xlu0 %114
  %118 = vset.pattern.permute.xlu0 0
  %119 = vperm.xlu0 %118, %v43
  %v120 = vpop.permute.xlu0 %119
  %123 = vset.pattern.permute.xlu0 0
  %124 = vperm.xlu0 %123, %v44
  %v125 = vpop.permute.xlu0 %124
  %v127 = vperm.slane %v46, 0
  %vm128 = vcmp.le.f32.partialorder %v50, %v127
  %vm129 = vcmp.le.f32.partialorder %v55, %v127
  %vm130 = vcmp.le.f32.partialorder %v60, %v127
  %vm131 = vcmp.le.f32.partialorder %v65, %v127
  %vm132 = vcmp.le.f32.partialorder %v70, %v127
  %vm133 = vcmp.le.f32.partialorder %v75, %v127
  %vm134 = vcmp.le.f32.partialorder %v80, %v127
  %vm135 = vcmp.le.f32.partialorder %v85, %v127
  %vm136 = vcmp.le.f32.partialorder %v90, %v127
  %vm137 = vcmp.le.f32.partialorder %v95, %v127
  %vm138 = vcmp.le.f32.partialorder %v100, %v127
  %vm139 = vcmp.le.f32.partialorder %v105, %v127
  %vm140 = vcmp.le.f32.partialorder %v110, %v127
  %vm141 = vcmp.le.f32.partialorder %v115, %v127
  %vm142 = vcmp.le.f32.partialorder %v120, %v127
  %vm143 = vcmp.le.f32.partialorder %v125, %v127
  %v144 = vsel %vm128, 1, 0
  %v145 = vsel %vm129, 1, 0
  %v146 = vsel %vm130, 1, 0
  %v147 = vsel %vm131, 1, 0
  %v148 = vsel %vm132, 1, 0
  %v149 = vsel %vm133, 1, 0
  %v150 = vsel %vm134, 1, 0
  %v151 = vsel %vm135, 1, 0
  %v152 = vsel %vm136, 1, 0
  %v153 = vsel %vm137, 1, 0
  %v154 = vsel %vm138, 1, 0
  %v155 = vsel %vm139, 1, 0
  %v156 = vsel %vm140, 1, 0
  %v157 = vsel %vm141, 1, 0
  %v158 = vsel %vm142, 1, 0
  %v159 = vsel %vm143, 1, 0
  %v160 = vcvt.s32.f32 %v144
  %v161 = vcvt.s32.f32 %v145
  %v162 = vcvt.s32.f32 %v146
  %v163 = vcvt.s32.f32 %v147
  %v164 = vcvt.s32.f32 %v148
  %v165 = vcvt.s32.f32 %v149
  %v166 = vcvt.s32.f32 %v150
  %v167 = vcvt.s32.f32 %v151
  %v168 = vcvt.s32.f32 %v152
  %v169 = vcvt.s32.f32 %v153
  %v170 = vcvt.s32.f32 %v154
  %v171 = vcvt.s32.f32 %v155
  %v172 = vcvt.s32.f32 %v156
  %v173 = vcvt.s32.f32 %v157
  %v174 = vcvt.s32.f32 %v158
  %v175 = vcvt.s32.f32 %v159
  %v176 = vpack.c.bf16 %v161, %v160
  %v177 = vpack.c.bf16 %v163, %v162
  %v178 = vpack.c.bf16 %v165, %v164
  %v179 = vpack.c.bf16 %v167, %v166
  %v180 = vpack.c.bf16 %v169, %v168
  %v181 = vpack.c.bf16 %v171, %v170
  %v182 = vpack.c.bf16 %v173, %v172
  %v183 = vpack.c.bf16 %v175, %v174
  %184 = vmatpush.bf16.msra.mxu0 %v183
  %185 = vmatpush.bf16.msra.mxu0 %v182
  %186 = vmatpush.bf16.msra.mxu0 %v181
  %187 = vmatpush.bf16.msra.mxu0 %v180
  %188 = vmatpush.bf16.msra.mxu0 %v179
  %189 = vmatpush.bf16.msra.mxu0 %v178
  %190 = vmatpush.bf16.msra.mxu0 %v177
  %191 = vmatpush.bf16.msra.mxu0 %v176
  %192 = vmatmul.bf16.gmra.mxu0 1065369472
  %v193 = vpop.f32.mrf.mxu0
  %v194 = vadd.f32 0.0, %v193
  %v195 = vpop.f32.mrf.mxu0
  %196 = vdwg.mxu0
  %vm197 = vcmp.ge.f32.partialorder %v194, 32.0
  %v198 = vsel %vm197, %v46, inf
  %v199 = vsel %vm18, %v198, inf
  %200 = vmin.xlane.f32.xlu0 %v199
  %v201 = vpop.xlane.xlu0 %200
  %v202 = vrot.slane %v201, 4
  %v203 = vmin.f32 %v201, %v202
  %v204 = vrot.slane %v203, 2
  %v205 = vmin.f32 %v203, %v204
  %v206 = vrot.slane %v205, 1
  %v207 = vmin.f32 %v205, %v206
  %s208 = vtos %v207
  %p209 = scmp.ne.f32.partialorder %s28, %s28
  %s210 = scalar_select %p209, nan, %s208
  %vm211 = vcmp.lt.s32.totalorder %v13, 128
  %vm212 = vcmp.lt.s32.totalorder %v14, 128
  %v213 = vstv %s28
  %v214 = vstv %s210
  %v215 = vsel %vm211, %v213, %v214
  %v216 = vsel %vm212, %v213, %v214
  %vm217 = vcmp.eq.s32.totalorder %v16, 0
  %v218 = vsel %vm217, %v215, 0.0
  %v219 = vsel %vm217, %v216, 0.0
  %s220 = scalar_lea.vmem %s0, 1
  %v221 = vld [vmem:[%s220] sm:$0x1]
  %v222 = vsel %vm18, %v221, 0.0
  %223 = vadd.xlane.f32.xlu0 %v222
  %v224 = vpop.xlane.xlu0 %223
  %v225 = vrot.slane %v224, 4
  %v226 = vadd.f32 %v224, %v225
  %v227 = vrot.slane %v226, 2
  %v228 = vadd.f32 %v226, %v227
  %v229 = vrot.slane %v228, 1
  %v230 = vadd.f32 %v228, %v229
  %s231 = vtos %v230
  %s232 = scalar_lea.vmem %s1, 128
  %v233 = vld [vmem:[%s232] sm:$0xff]
  %v234 = vld [vmem:[%s232 + $0x8] sm:$0xff]
  %v235 = vld [vmem:[%s232 + $0x10] sm:$0xff]
  %v236 = vld [vmem:[%s232 + $0x18] sm:$0xff]
  %v237 = vld [vmem:[%s232 + $0x20] sm:$0xff]
  %v238 = vld [vmem:[%s232 + $0x28] sm:$0xff]
  %v239 = vld [vmem:[%s232 + $0x30] sm:$0xff]
  %v240 = vld [vmem:[%s232 + $0x38] sm:$0xff]
  %v241 = vld [vmem:[%s232 + $0x40] sm:$0xff]
  %v242 = vld [vmem:[%s232 + $0x48] sm:$0xff]
  %v243 = vld [vmem:[%s232 + $0x50] sm:$0xff]
  %v244 = vld [vmem:[%s232 + $0x58] sm:$0xff]
  %v245 = vld [vmem:[%s232 + $0x60] sm:$0xff]
  %v246 = vld [vmem:[%s232 + $0x68] sm:$0xff]
  %v247 = vld [vmem:[%s232 + $0x70] sm:$0xff]
  %v248 = vld [vmem:[%s232 + $0x78] sm:$0xff]
  %v249 = vsel %vm45, %v221, inf
  %251 = vset.pattern.permute.xlu0 0
  %252 = vperm.xlu0 %251, %v233
  %v253 = vpop.permute.xlu0 %252
  %256 = vset.pattern.permute.xlu0 0
  %257 = vperm.xlu0 %256, %v234
  %v258 = vpop.permute.xlu0 %257
  %261 = vset.pattern.permute.xlu0 0
  %262 = vperm.xlu0 %261, %v235
  %v263 = vpop.permute.xlu0 %262
  %266 = vset.pattern.permute.xlu0 0
  %267 = vperm.xlu0 %266, %v236
  %v268 = vpop.permute.xlu0 %267
  %271 = vset.pattern.permute.xlu0 0
  %272 = vperm.xlu0 %271, %v237
  %v273 = vpop.permute.xlu0 %272
  %276 = vset.pattern.permute.xlu0 0
  %277 = vperm.xlu0 %276, %v238
  %v278 = vpop.permute.xlu0 %277
  %281 = vset.pattern.permute.xlu0 0
  %282 = vperm.xlu0 %281, %v239
  %v283 = vpop.permute.xlu0 %282
  %286 = vset.pattern.permute.xlu0 0
  %287 = vperm.xlu0 %286, %v240
  %v288 = vpop.permute.xlu0 %287
  %291 = vset.pattern.permute.xlu0 0
  %292 = vperm.xlu0 %291, %v241
  %v293 = vpop.permute.xlu0 %292
  %296 = vset.pattern.permute.xlu0 0
  %297 = vperm.xlu0 %296, %v242
  %v298 = vpop.permute.xlu0 %297
  %301 = vset.pattern.permute.xlu0 0
  %302 = vperm.xlu0 %301, %v243
  %v303 = vpop.permute.xlu0 %302
  %306 = vset.pattern.permute.xlu0 0
  %307 = vperm.xlu0 %306, %v244
  %v308 = vpop.permute.xlu0 %307
  %311 = vset.pattern.permute.xlu0 0
  %312 = vperm.xlu0 %311, %v245
  %v313 = vpop.permute.xlu0 %312
  %316 = vset.pattern.permute.xlu0 0
  %317 = vperm.xlu0 %316, %v246
  %v318 = vpop.permute.xlu0 %317
  %321 = vset.pattern.permute.xlu0 0
  %322 = vperm.xlu0 %321, %v247
  %v323 = vpop.permute.xlu0 %322
  %326 = vset.pattern.permute.xlu0 0
  %327 = vperm.xlu0 %326, %v248
  %v328 = vpop.permute.xlu0 %327
  %v330 = vperm.slane %v249, 0
  %vm331 = vcmp.le.f32.partialorder %v253, %v330
  %vm332 = vcmp.le.f32.partialorder %v258, %v330
  %vm333 = vcmp.le.f32.partialorder %v263, %v330
  %vm334 = vcmp.le.f32.partialorder %v268, %v330
  %vm335 = vcmp.le.f32.partialorder %v273, %v330
  %vm336 = vcmp.le.f32.partialorder %v278, %v330
  %vm337 = vcmp.le.f32.partialorder %v283, %v330
  %vm338 = vcmp.le.f32.partialorder %v288, %v330
  %vm339 = vcmp.le.f32.partialorder %v293, %v330
  %vm340 = vcmp.le.f32.partialorder %v298, %v330
  %vm341 = vcmp.le.f32.partialorder %v303, %v330
  %vm342 = vcmp.le.f32.partialorder %v308, %v330
  %vm343 = vcmp.le.f32.partialorder %v313, %v330
  %vm344 = vcmp.le.f32.partialorder %v318, %v330
  %vm345 = vcmp.le.f32.partialorder %v323, %v330
  %vm346 = vcmp.le.f32.partialorder %v328, %v330
  %v347 = vsel %vm331, 1, 0
  %v348 = vsel %vm332, 1, 0
  %v349 = vsel %vm333, 1, 0
  %v350 = vsel %vm334, 1, 0
  %v351 = vsel %vm335, 1, 0
  %v352 = vsel %vm336, 1, 0
  %v353 = vsel %vm337, 1, 0
  %v354 = vsel %vm338, 1, 0
  %v355 = vsel %vm339, 1, 0
  %v356 = vsel %vm340, 1, 0
  %v357 = vsel %vm341, 1, 0
  %v358 = vsel %vm342, 1, 0
  %v359 = vsel %vm343, 1, 0
  %v360 = vsel %vm344, 1, 0
  %v361 = vsel %vm345, 1, 0
  %v362 = vsel %vm346, 1, 0
  %v363 = vcvt.s32.f32 %v347
  %v364 = vcvt.s32.f32 %v348
  %v365 = vcvt.s32.f32 %v349
  %v366 = vcvt.s32.f32 %v350
  %v367 = vcvt.s32.f32 %v351
  %v368 = vcvt.s32.f32 %v352
  %v369 = vcvt.s32.f32 %v353
  %v370 = vcvt.s32.f32 %v354
  %v371 = vcvt.s32.f32 %v355
  %v372 = vcvt.s32.f32 %v356
  %v373 = vcvt.s32.f32 %v357
  %v374 = vcvt.s32.f32 %v358
  %v375 = vcvt.s32.f32 %v359
  %v376 = vcvt.s32.f32 %v360
  %v377 = vcvt.s32.f32 %v361
  %v378 = vcvt.s32.f32 %v362
  %v379 = vpack.c.bf16 %v364, %v363
  %v380 = vpack.c.bf16 %v366, %v365
  %v381 = vpack.c.bf16 %v368, %v367
  %v382 = vpack.c.bf16 %v370, %v369
  %v383 = vpack.c.bf16 %v372, %v371
  %v384 = vpack.c.bf16 %v374, %v373
  %v385 = vpack.c.bf16 %v376, %v375
  %v386 = vpack.c.bf16 %v378, %v377
  %387 = vmatpush.bf16.msra.mxu0 %v386
  %388 = vmatpush.bf16.msra.mxu0 %v385
  %389 = vmatpush.bf16.msra.mxu0 %v384
  %390 = vmatpush.bf16.msra.mxu0 %v383
  %391 = vmatpush.bf16.msra.mxu0 %v382
  %392 = vmatpush.bf16.msra.mxu0 %v381
  %393 = vmatpush.bf16.msra.mxu0 %v380
  %394 = vmatpush.bf16.msra.mxu0 %v379
  %395 = vmatmul.bf16.gmra.mxu0 1065369472
  %v396 = vpop.f32.mrf.mxu0
  %v397 = vadd.f32 0.0, %v396
  %v398 = vpop.f32.mrf.mxu0
  %399 = vdwg.mxu0
  %vm400 = vcmp.ge.f32.partialorder %v397, 32.0
  %v401 = vsel %vm400, %v249, inf
  %v402 = vsel %vm18, %v401, inf
  %403 = vmin.xlane.f32.xlu0 %v402
  %v404 = vpop.xlane.xlu0 %403
  %v405 = vrot.slane %v404, 4
  %v406 = vmin.f32 %v404, %v405
  %v407 = vrot.slane %v406, 2
  %v408 = vmin.f32 %v406, %v407
  %v409 = vrot.slane %v408, 1
  %v410 = vmin.f32 %v408, %v409
  %s411 = vtos %v410
  %p412 = scmp.ne.f32.partialorder %s231, %s231
  %s413 = scalar_select %p412, nan, %s411
  %v414 = vstv %s231
  %v415 = vstv %s413
  %v416 = vsel %vm211, %v414, %v415
  %v417 = vsel %vm212, %v414, %v415
  %vm418 = vcmp.eq.s32.totalorder %v16, 1
  %v419 = vsel %vm418, %v416, %v218
  %v420 = vsel %vm418, %v417, %v219
  %v423 = vrot.slane %v420, 6
  %vm424 = vcmask 1041408
  %v425 = vsel %vm424, %v419, %v423
  %427 = vst [vmem:[%s2] sm:$0xf] %v425
  // Predicated region
  $region10: #{_rsd_forward.1} parent=0 // pred_check
    _
  $region11: #{_rsd_forward.1} parent=0 // pred_check_branch
    %429 = sbr.rel (0) target = $region13
  $region12: #{_rsd_forward.1} parent=0 // pred_region
    _
  $region13: #{_rsd_forward.1} parent=0 // pred_fallthru
    _
  // Predicated region
  $region14: #{_rsd_forward.1} parent=0 // pred_check
    _
  $region15: #{_rsd_forward.1} parent=0 // pred_check_branch
    %431 = sbr.rel (0) target = $region17
  $region16: #{_rsd_forward.1} parent=0 // pred_region
    _
  $region17: #{_rsd_forward.1} parent=0 // pred_fallthru
    _

</llo_original>
